<compile_context>
chip_gen: v7x
topology: tpu7x:2x2x1
jax: 0.10.0
libtpu: 0.0.40
codegen_flags: <defaults>
</compile_context>

<pallas_src>
import jax
import jax.numpy as jnp
from jax.experimental import pallas as pl
from jax.experimental.pallas import tpu as pltpu


def _make_pool_kernel(red_axes, pool, reduce_all_nodes):
    """Build a kernel pooling the node axes `red_axes` of a (N1, N2, D) block."""

    def kernel(x_ref, m_ref, o_ref):
        x = x_ref[0]                                   # (N1, N2, D) compute dtype
        mi = m_ref[0]                                  # (N1, N2) int8 mask
        mf = mi.astype(x.dtype)                        # 0/1 mask, compute dtype
        mb = mf[..., None]                             # (N1, N2, 1)

        if pool == "sum":
            y = jnp.sum(x * mb, axis=red_axes)
        elif pool == "mean":
            s = jnp.sum(x * mb, axis=red_axes)
            cnt = jnp.sum(mf, axis=red_axes)
            y = s / jnp.maximum(cnt, 1.0)[..., None]
        elif pool == "max":
            big_neg = jnp.finfo(x.dtype).min
            y = jnp.max(jnp.where((mi != 0)[..., None], x, big_neg), axis=red_axes)
        else:
            raise ValueError(f"unsupported pool: {pool}")

        # The output MaskedTensor is padded with 0 outside its (pooled) mask.
        out_mask = jnp.max(mf, axis=red_axes)          # 0/1 over kept node dims
        y = y * out_mask[..., None]

        o_ref[...] = y.reshape(o_ref.shape).astype(o_ref.dtype)

    return kernel


def op_pooling(data, mask, dims, pool="sum"):
    """Masked pooling over node dims of a dense 2-order MaskedTensor.

    data: (B, N1, N2, D) float; mask: (B, N1, N2) bool/int.
    dims: int or iterable of ints drawn from {1, 2} (node dims of `data`).
    Returns (pooled_data, pooled_mask), i.e. the MaskedTensor output with
    keepdim=False.
    """
    if isinstance(dims, int):
        dims = [dims]
    dims = sorted(set(int(d) for d in dims))
    assert data.ndim == 4 and mask.ndim == 3, "expect (B,N1,N2,D) data, (B,N1,N2) mask"
    assert all(d in (1, 2) for d in dims), "pooling dims must be node dims (1 and/or 2)"

    B, N1, N2, D = data.shape
    red_axes = tuple(d - 1 for d in dims)              # node axes inside the block
    kept_node = tuple(n for a, n in enumerate((N1, N2)) if a not in red_axes)
    reduce_all_nodes = len(kept_node) == 0
    out_node = kept_node if kept_node else (1,)        # keep a unit dim for alignment
    out_shape = (B,) + out_node + (D,)

    # Perf: keep the mask at 1 byte/element on the HBM side; apply it in-kernel.
    mask_i8 = mask.astype(jnp.int8)

    kernel = _make_pool_kernel(red_axes, pool, reduce_all_nodes)

    grid_spec = pltpu.PrefetchScalarGridSpec(
        num_scalar_prefetch=0,
        grid=(B,),
        in_specs=[
            pl.BlockSpec((1, N1, N2, D), lambda i: (i, 0, 0, 0)),  # data, per batch
            pl.BlockSpec((1, N1, N2), lambda i: (i, 0, 0)),        # int8 mask, per batch
        ],
        out_specs=pl.BlockSpec(
            (1,) + out_node + (D,),
            lambda i: (i,) + (0,) * (len(out_node) + 1),           # per-batch output block
        ),
    )

    pooled = pl.pallas_call(
        kernel,
        out_shape=jax.ShapeDtypeStruct(out_shape, data.dtype),
        grid_spec=grid_spec,
        compiler_params=pltpu.CompilerParams(
            # Per-batch output blocks -> batch axis is truly independent.
            dimension_semantics=("parallel",),
        ),
    )(data, mask_i8)

    if reduce_all_nodes:
        pooled = pooled.reshape(B, D)                  # keepdim=False

    pooled_mask = jnp.any(mask.astype(bool), axis=tuple(dims))
    return pooled, pooled_mask


if __name__ == "__main__":
    B, N, D = 2, 16, 32
    key = jax.random.PRNGKey(0)
    X = jax.random.normal(key, (B, N, N, D), dtype=jnp.float32)

    # Deterministic node masks: batch 0 has 11 valid nodes, batch 1 has 16.
    n_valid = jnp.array([11, 16], dtype=jnp.int32)
    node_mask = jnp.arange(N)[None, :] < n_valid[:, None]       # (B, N) bool
    mask = node_mask[:, :, None] & node_mask[:, None, :]        # (B, N, N) bool

    maskf = mask.astype(jnp.float32)[..., None]
    Xf = X * maskf

    # OpPooling(dims=1, pool='sum')  -- the module's default pooling.
    out_sum, om_sum = op_pooling(X, mask, dims=1, pool="sum")
    out_sum = jax.block_until_ready(out_sum)
    ref_sum = jnp.sum(Xf, axis=1)
    assert out_sum.shape == (B, N, D) and out_sum.dtype == jnp.float32
    assert jnp.allclose(out_sum, ref_sum, atol=1e-4, rtol=1e-4), "sum pooling mismatch"
    assert jnp.array_equal(om_sum, jnp.any(mask, axis=1)), "sum pooling mask mismatch"

    # OpPooling(dims=2, pool='mean')
    out_mean, _ = op_pooling(X, mask, dims=2, pool="mean")
    out_mean = jax.block_until_ready(out_mean)
    cnt = jnp.maximum(jnp.sum(maskf[..., 0], axis=2), 1.0)      # (B, N)
    ref_mean = (jnp.sum(Xf, axis=2) / cnt[..., None]) * jnp.any(mask, axis=2)[..., None]
    assert jnp.allclose(out_mean, ref_mean, atol=1e-4, rtol=1e-4), "mean pooling mismatch"

    # OpPooling(dims=[1, 2], pool='max')  -- graph-level readout.
    out_max, om_max = op_pooling(X, mask, dims=[1, 2], pool="max")
    out_max = jax.block_until_ready(out_max)
    big_neg = jnp.finfo(jnp.float32).min
    ref_max = jnp.max(jnp.where(mask[..., None], X, big_neg), axis=(1, 2))
    ref_max = ref_max * jnp.any(mask, axis=(1, 2))[..., None]
    assert out_max.shape == (B, D)
    assert jnp.allclose(out_max, ref_max, atol=1e-4, rtol=1e-4), "max pooling mismatch"

    print("KERNEL_OK")
</pallas_src>

<mosaic_0001>
module attributes {stable_mosaic.version = 11 : i64} {
  func.func @kernel(%arg0: i32, %arg1: memref<1x16x16x32xf32, #tpu.memory_space<vmem>>, %arg2: memref<1x16x16xi8, #tpu.memory_space<vmem>>, %arg3: memref<1x16x32xf32, #tpu.memory_space<vmem>>) attributes {dimension_semantics = [#tpu.dimension_semantics<parallel>], iteration_bounds = array<i64: 2>, scalar_prefetch = 0 : i64, scratch_operands = 0 : i64, tpu.core_type = #tpu.core_type<tc>, window_params = [{transform_indices = @transform_0, window_bounds = array<i64: 1, 16, 16, 32>}, {transform_indices = @transform_1, window_bounds = array<i64: 1, 16, 16>}, {transform_indices = @transform_2, window_bounds = array<i64: 1, 16, 32>}]} {
    %c0 = arith.constant 0 : index
    %c0_0 = arith.constant 0 : index
    %c0_1 = arith.constant 0 : index
    %c0_2 = arith.constant 0 : index
    %0 = vector.load %arg1[%c0, %c0_0, %c0_1, %c0_2] : memref<1x16x16x32xf32, #tpu.memory_space<vmem>>, vector<1x16x16x32xf32>
    %1 = vector.shape_cast %0 : vector<1x16x16x32xf32> to vector<16x16x32xf32>
    %c0_3 = arith.constant 0 : index
    %c0_4 = arith.constant 0 : index
    %c0_5 = arith.constant 0 : index
    %2 = vector.load %arg2[%c0_3, %c0_4, %c0_5] : memref<1x16x16xi8, #tpu.memory_space<vmem>>, vector<1x16x16xi8>
    %3 = vector.shape_cast %2 : vector<1x16x16xi8> to vector<16x16xi8>
    %4 = arith.sitofp %3 : vector<16x16xi8> to vector<16x16xf32>
    %5 = vector.shape_cast %4 : vector<16x16xf32> to vector<16x16x1xf32>
    %6 = vector.broadcast %5 : vector<16x16x1xf32> to vector<16x16x32xf32>
    %7 = arith.mulf %1, %6 : vector<16x16x32xf32>
    %cst = arith.constant dense<0.000000e+00> : vector<16x32xf32>
    %8 = vector.multi_reduction <add>, %7, %cst [0] : vector<16x16x32xf32> to vector<16x32xf32>
    %cst_6 = arith.constant dense<0xFF800000> : vector<16xf32>
    %9 = vector.multi_reduction <maximumf>, %4, %cst_6 [0] : vector<16x16xf32> to vector<16xf32>
    %10 = vector.shape_cast %9 : vector<16xf32> to vector<16x1xf32>
    %11 = vector.broadcast %10 : vector<16x1xf32> to vector<16x32xf32>
    %12 = arith.mulf %8, %11 : vector<16x32xf32>
    %13 = vector.shape_cast %12 : vector<16x32xf32> to vector<1x16x32xf32>
    %c0_7 = arith.constant 0 : index
    %c0_8 = arith.constant 0 : index
    %c0_9 = arith.constant 0 : index
    %14 = vector.load %arg3[%c0_7, %c0_8, %c0_9] : memref<1x16x32xf32, #tpu.memory_space<vmem>>, vector<1x16x32xf32>
    tpu.vector_store %arg3[%c0_7, %c0_8, %c0_9], %13 {strides = array<i32>} : memref<1x16x32xf32, #tpu.memory_space<vmem>>, vector<1x16x32xf32>,
    return
  }
  func.func @transform_0(%arg0: i32) -> (i32, i32, i32, i32) {
    %c0_i32 = arith.constant 0 : i32
    %c0_i32_0 = arith.constant 0 : i32
    %c0_i32_1 = arith.constant 0 : i32
    %c0_i32_2 = arith.constant 0 : i32
    return %arg0, %c0_i32, %c0_i32_0, %c0_i32_1 : i32, i32, i32, i32
  }
  func.func @transform_1(%arg0: i32) -> (i32, i32, i32) {
    %c0_i32 = arith.constant 0 : i32
    %c0_i32_0 = arith.constant 0 : i32
    %c0_i32_1 = arith.constant 0 : i32
    return %arg0, %c0_i32, %c0_i32_0 : i32, i32, i32
  }
  func.func @transform_2(%arg0: i32) -> (i32, i32, i32) {
    %c0_i32 = arith.constant 0 : i32
    %c0_i32_0 = arith.constant 0 : i32
    %c0_i32_1 = arith.constant 0 : i32
    return %arg0, %c0_i32, %c0_i32_0 : i32, i32, i32
  }
}

</mosaic_0001>

<llo_original>
// kernel: tpu_custom_call.1
$region0: #{tpu_custom_call.1}
  #allocation0 [shape = 'u32[]', space=smem, size = 0x4, offset = 0x4, fixed_abs, tag = 'smem constant byte address 0x4 - core index']
  #allocation1 [shape = 'u32[144,128]{1,0:T(1,128)}', space=vmem, size = 0x12000, scoped, tag = 'internal scratch']
  %s0 = inlined_call_operand.hbm [shape: f32[2,16,16,32], index: 0, kind: input, shape index: {}]
  %s1 = inlined_call_operand.hbm [shape: s8[2,16,16], index: 1, kind: input, shape index: {}]
  %s2 = inlined_call_operand.hbm [shape: f32[2,16,32], index: 2, kind: output, shape index: {}]
  %s3 = sld [smem:[#allocation0]]
  $region49: #{tpu_custom_call.1} parent=0
    _
  %s5 = ssub.s32 1, %s3
  %s6 = scalar_select 0, %s5, %s3
  $region1: #{tpu_custom_call.1} parent=0
    #allocation2 [shape = 'u8[262144]{0}', space=vmem, size = 0x40000, scoped, tag = 'input window, operand 0']
    #allocation3 [shape = 's32[2]{0}', space=sflag, size = 0x8, scoped, tag = 'scoped memory for tpu_custom_call.1']
    #allocation4 [shape = 's32[2]{0}', space=sflag, size = 0x8, scoped, tag = 'scoped memory for tpu_custom_call.1']
    #allocation5 [shape = 'u8[4096]{0}', space=vmem, size = 0x1000, scoped, tag = 'input window, operand 1']
    #allocation6 [shape = 's32[2]{0}', space=sflag, size = 0x8, scoped, tag = 'scoped memory for tpu_custom_call.1']
    #allocation7 [shape = 'u8[16384]{0}', space=vmem, size = 0x4000, scoped, tag = 'output window, operand 0']
    %7 = vsyncpa [#allocation3], 0
    %s8 = scalar_lea.sflag [#allocation3], 1
    %9 = vsyncpa %s8, 0
    %10 = vsyncpa [#allocation6], 0
    %s11 = scalar_lea.sflag [#allocation6], 1
    %12 = vsyncpa %s11, 0
    %13 = vsyncpa [#allocation4], 0
    %s14 = scalar_lea.sflag [#allocation4], 1
    %15 = vsyncpa %s14, 0
    loop: start=0, step=1, limit=4
    $region2: #{tpu_custom_call.1} parent=1 // loop_pre_header
      _
    $region3: #{tpu_custom_call.1} parent=1 // loop_header
      %s17 = sphi 0, %s21
      %p18 = scmp.ge.s32.totalorder %s17, 4
      %s27 = sphi 0, %s29
      %s30 = sphi 0, %s27
      %s31 = sphi 0, %s30
      %s47 = sphi 0, %s31
      %s53 = sphi 0, %s55
      %s56 = sphi 0, %s53
      %s57 = sphi 0, %s56
      %s73 = sphi 0, %s57
      %s79 = sphi 0, %s81
      %s82 = sphi 0, %s79
      %s83 = sphi 0, %s82
      %s99 = sphi 0, %s83
    $region4: #{tpu_custom_call.1} parent=1 // loop_header_branch
      %20 = sbr.rel (%p18) target = $region8
    $region5: #{tpu_custom_call.1} parent=1 // loop_body
      %s22 = ssub.s32 %s17, 1
      %s23 = ssub.s32 %s17, 2
      %s24 = sadd.s32 %s17, 1
      %s25 = ssub.s32 %s17, %s24
      %p26 = scmp.eq.s32.totalorder %s25, 0
      %s28 = sadd.s32 %s27, 1
      %s29 = scalar_select %p26, %s27, %s28
      %p32 = pneg %p26
      %p33 = scmp.eq.s32.totalorder %s17, 1
      %p34 = por %p32, %p33
      %p35 = scmp.ne.s32.totalorder %s27, %s30
      %p36 = scmp.eq.s32.totalorder %s17, 0
      %p37 = por %p35, %p36
      %p38 = scmp.ne.s32.totalorder %s27, %s30
      %p39 = scmp.eq.s32.totalorder %s22, 1
      %p40 = por %p38, %p39
      %p41 = scmp.ne.s32.totalorder %s30, %s31
      %p42 = scmp.eq.s32.totalorder %s22, 0
      %p43 = por %p41, %p42
      %p44 = scmp.ne.s32.totalorder %s30, %s31
      %p45 = scmp.eq.s32.totalorder %s23, 1
      %p46 = por %p44, %p45
      %p48 = scmp.ne.s32.totalorder %s31, %s47
      %p49 = scmp.eq.s32.totalorder %s23, 0
      %p50 = por %p48, %p49
      %s51 = ssub.s32 %s17, %s24
      %p52 = scmp.eq.s32.totalorder %s51, 0
      %s54 = sadd.s32 %s53, 1
      %s55 = scalar_select %p52, %s53, %s54
      %p58 = pneg %p52
      %p59 = scmp.eq.s32.totalorder %s17, 1
      %p60 = por %p58, %p59
      %p61 = scmp.ne.s32.totalorder %s53, %s56
      %p62 = scmp.eq.s32.totalorder %s17, 0
      %p63 = por %p61, %p62
      %p64 = scmp.ne.s32.totalorder %s53, %s56
      %p65 = scmp.eq.s32.totalorder %s22, 1
      %p66 = por %p64, %p65
      %p67 = scmp.ne.s32.totalorder %s56, %s57
      %p68 = scmp.eq.s32.totalorder %s22, 0
      %p69 = por %p67, %p68
      %p70 = scmp.ne.s32.totalorder %s56, %s57
      %p71 = scmp.eq.s32.totalorder %s23, 1
      %p72 = por %p70, %p71
      %p74 = scmp.ne.s32.totalorder %s57, %s73
      %p75 = scmp.eq.s32.totalorder %s23, 0
      %p76 = por %p74, %p75
      %s77 = ssub.s32 %s17, %s24
      %p78 = scmp.eq.s32.totalorder %s77, 0
      %s80 = sadd.s32 %s79, 1
      %s81 = scalar_select %p78, %s79, %s80
      %p84 = pneg %p78
      %p85 = scmp.eq.s32.totalorder %s17, 1
      %p86 = por %p84, %p85
      %p87 = scmp.ne.s32.totalorder %s79, %s82
      %p88 = scmp.eq.s32.totalorder %s17, 0
      %p89 = por %p87, %p88
      %p90 = scmp.ne.s32.totalorder %s79, %s82
      %p91 = scmp.eq.s32.totalorder %s22, 1
      %p92 = por %p90, %p91
      %p93 = scmp.ne.s32.totalorder %s82, %s83
      %p94 = scmp.eq.s32.totalorder %s22, 0
      %p95 = por %p93, %p94
      %p96 = scmp.ne.s32.totalorder %s82, %s83
      %p97 = scmp.eq.s32.totalorder %s23, 1
      %p98 = por %p96, %p97
      %p100 = scmp.ne.s32.totalorder %s83, %s99
      %p101 = scmp.eq.s32.totalorder %s23, 0
      %p102 = por %p100, %p101
      %p103 = scmp.le.s32.totalorder 1, %s17
      %p104 = scmp.lt.s32.totalorder %s17, 3
      %p105 = pnand %p103, %p104
      %p106 = pneg %p105
      // Predicated region
      $region9: #{tpu_custom_call.1} parent=5 // pred_check
        _
      $region10: #{tpu_custom_call.1} parent=5 // pred_check_branch
        %108 = sbr.rel (%p105) target = $region12
      $region11: #{tpu_custom_call.1} parent=5 // pred_region
        %s109 = ssub.s32 %s17, 1
      $region12: #{tpu_custom_call.1} parent=5 // pred_fallthru
        _
      %p110 = scmp.lt.s32.totalorder %s17, 2
      // Predicated region
      $region13: #{tpu_custom_call.1} parent=5 // pred_check
        %p111 = pneg %p110
      $region14: #{tpu_custom_call.1} parent=5 // pred_check_branch
        %113 = sbr.rel (%p111) target = $region16
      $region15: #{tpu_custom_call.1} parent=5 // pred_region
        // Predicated region
        $region17: #{tpu_custom_call.1} parent=15 // pred_check
          %p114 = pneg %p37
        $region18: #{tpu_custom_call.1} parent=15 // pred_check_branch
          %116 = sbr.rel (%p114) target = $region20
        $region19: #{tpu_custom_call.1} parent=15 // pred_region
          %s117 = sand.u32 %s27, 1
          %s118 = scalar_lea.sflag [#allocation3], %s117
          %s119 = sand.u32 %s27, 1
          %s120 = smul.addr %s119, 256
          %s121 = scalar_lea.vmem [#allocation2], %s120
          %s123 = ssub.s32 4096, 4096
          %124 = vsyncadd %s118, %s123
          %s125 = smul.addr %s17, 32
          %s126 = smul.addr %s125, 128
          %s127 = scalar_lea.hbm %s0, %s126
          %s128 = sshll.u32 %s121, 4
          %s129 = int_to_ptr.vmem [resolvable:$true] %s128
          %134 = dma.hbm_to_vmem [thread:$0]  %s127, 4096, %s129, %s118, 128, 128, 8
        $region20: #{tpu_custom_call.1} parent=15 // pred_fallthru
          _
        // Predicated region
        $region21: #{tpu_custom_call.1} parent=15 // pred_check
          %p135 = pneg %p63
        $region22: #{tpu_custom_call.1} parent=15 // pred_check_branch
          %137 = sbr.rel (%p135) target = $region24
        $region23: #{tpu_custom_call.1} parent=15 // pred_region
          %s138 = sand.u32 %s53, 1
          %s139 = scalar_lea.sflag [#allocation6], %s138
          %s140 = sand.u32 %s53, 1
          %s141 = smul.addr %s140, 4
          %s142 = scalar_lea.vmem [#allocation5], %s141
          %s144 = ssub.s32 64, 64
          %145 = vsyncadd %s139, %s144
          %s146 = smul.addr %s17, 2
          %s147 = smul.addr %s146, 32
          %s148 = scalar_lea.hbm %s1, %s147
          %s149 = sshll.u32 %s142, 4
          %s150 = int_to_ptr.vmem [resolvable:$true] %s149
          %155 = dma.hbm_to_vmem [thread:$0]  %s148, 64, %s150, %s139, 32, 32, 2
        $region24: #{tpu_custom_call.1} parent=15 // pred_fallthru
          _
      $region16: #{tpu_custom_call.1} parent=5 // pred_fallthru
        _
      %p156 = scmp.le.s32.totalorder 1, %s17
      %p157 = scmp.lt.s32.totalorder %s17, 3
      %p158 = pnand %p156, %p157
      %p159 = pneg %p158
      // Predicated region
      $region25: #{tpu_custom_call.1} parent=5 // pred_check
        _
      $region26: #{tpu_custom_call.1} parent=5 // pred_check_branch
        %161 = sbr.rel (%p158) target = $region28
      $region27: #{tpu_custom_call.1} parent=5 // pred_region
        %s162 = ssub.s32 %s17, 1
        %s163 = sand.u32 %s30, 1
        %s164 = scalar_lea.sflag [#allocation3], %s163
        %s165 = sand.u32 %s30, 1
        %s166 = smul.addr %s165, 256
        %s167 = scalar_lea.vmem [#allocation2], %s166
        // Predicated region
        $region29: #{tpu_custom_call.1} parent=27 // pred_check
          %p168 = pneg %p43
        $region30: #{tpu_custom_call.1} parent=27 // pred_check_branch
          %170 = sbr.rel (%p168) target = $region32
        $region31: #{tpu_custom_call.1} parent=27 // pred_region
          %171 = dma.done %s164, 4096
        $region32: #{tpu_custom_call.1} parent=27 // pred_fallthru
          _
        %s172 = sand.u32 %s56, 1
        %s173 = scalar_lea.sflag [#allocation6], %s172
        %s174 = sand.u32 %s56, 1
        %s175 = smul.addr %s174, 4
        %s176 = scalar_lea.vmem [#allocation5], %s175
        // Predicated region
        $region33: #{tpu_custom_call.1} parent=27 // pred_check
          %p177 = pneg %p69
        $region34: #{tpu_custom_call.1} parent=27 // pred_check_branch
          %179 = sbr.rel (%p177) target = $region36
        $region35: #{tpu_custom_call.1} parent=27 // pred_region
          %180 = dma.done %s173, 64
        $region36: #{tpu_custom_call.1} parent=27 // pred_fallthru
          _
        %s181 = sand.u32 %s30, 1
        %s182 = scalar_lea.sflag [#allocation3], %s181
        %s183 = sand.u32 %s30, 1
        %s184 = smul.addr %s183, 256
        %s185 = scalar_lea.vmem [#allocation2], %s184
        %p186 = pneg %p43
        %p187 = pneg %p40
        %s188 = sand.u32 %s56, 1
        %s189 = scalar_lea.sflag [#allocation6], %s188
        %s190 = sand.u32 %s56, 1
        %s191 = smul.addr %s190, 4
        %s192 = scalar_lea.vmem [#allocation5], %s191
        %p193 = pneg %p69
        %p194 = pneg %p66
        %p195 = pneg %p95
        %p196 = pneg %p92
        %s197 = sand.u32 %s82, 1
        %s198 = scalar_lea.sflag [#allocation4], %s197
        %s199 = sand.u32 %s82, 1
        %s200 = smul.addr %s199, 16
        %s201 = scalar_lea.vmem [#allocation7], %s200
        %v202 = vld [vmem:[%s167] sm:$0xff]
        %v203 = vld [vmem:[%s167 + $0x8] sm:$0xff]
        %v204 = vld [vmem:[%s167 + $0x10] sm:$0xff]
        %v205 = vld [vmem:[%s167 + $0x18] sm:$0xff]
        %v206 = vld [vmem:[%s167 + $0x20] sm:$0xff]
        %v207 = vld [vmem:[%s167 + $0x28] sm:$0xff]
        %v208 = vld [vmem:[%s167 + $0x30] sm:$0xff]
        %v209 = vld [vmem:[%s167 + $0x38] sm:$0xff]
        %v210 = vld [vmem:[%s167 + $0x40] sm:$0xff]
        %v211 = vld [vmem:[%s167 + $0x48] sm:$0xff]
        %v212 = vld [vmem:[%s167 + $0x50] sm:$0xff]
        %v213 = vld [vmem:[%s167 + $0x58] sm:$0xff]
        %v214 = vld [vmem:[%s167 + $0x60] sm:$0xff]
        %v215 = vld [vmem:[%s167 + $0x68] sm:$0xff]
        %v216 = vld [vmem:[%s167 + $0x70] sm:$0xff]
        %v217 = vld [vmem:[%s167 + $0x78] sm:$0xff]
        %v218 = vld [vmem:[%s167 + $0x80] sm:$0xff]
        %v219 = vld [vmem:[%s167 + $0x88] sm:$0xff]
        %v220 = vld [vmem:[%s167 + $0x90] sm:$0xff]
        %v221 = vld [vmem:[%s167 + $0x98] sm:$0xff]
        %v222 = vld [vmem:[%s167 + $0xa0] sm:$0xff]
        %v223 = vld [vmem:[%s167 + $0xa8] sm:$0xff]
        %v224 = vld [vmem:[%s167 + $0xb0] sm:$0xff]
        %v225 = vld [vmem:[%s167 + $0xb8] sm:$0xff]
        %v226 = vld [vmem:[%s167 + $0xc0] sm:$0xff]
        %v227 = vld [vmem:[%s167 + $0xc8] sm:$0xff]
        %v228 = vld [vmem:[%s167 + $0xd0] sm:$0xff]
        %v229 = vld [vmem:[%s167 + $0xd8] sm:$0xff]
        %v230 = vld [vmem:[%s167 + $0xe0] sm:$0xff]
        %v231 = vld [vmem:[%s167 + $0xe8] sm:$0xff]
        %v232 = vld [vmem:[%s167 + $0xf0] sm:$0xff]
        %v233 = vld [vmem:[%s167 + $0xf8] sm:$0xff]
        %v234 = vld [vmem:[%s176] sm:$0x3]
        %v235 = vld [vmem:[%s176 + $0x2] sm:$0x3]
        %v236 = vunpack.c.0.s8 %v234
        %v237 = vunpack.c.0.s8 %v235
        %v238 = vcvt.s32.f32 %v236
        %v239 = vcvt.s32.f32 %v237
        %v240 = vlaneseq
        %v241 = vshrl.u32 %v240, 7
        %v242 = vsub.s32 0, %v241
        %v243 = vrot.slane %v238, %v242
        %245 = vbcast.lane.b32.xlu0 %v243, 256
        %v246 = vpop.permute.xlu0 %245
        %s248 = sor.u32 256, 8
        %249 = vbcast.lane.b32.xlu0 %v243, %s248
        %v250 = vpop.permute.xlu0 %249
        %v251 = vlaneseq
        %v252 = vshrl.u32 %v251, 7
        %v253 = vsub.s32 1, %v252
        %v254 = vrot.slane %v238, %v253
        %256 = vbcast.lane.b32.xlu0 %v254, 256
        %v257 = vpop.permute.xlu0 %256
        %s259 = sor.u32 256, 8
        %260 = vbcast.lane.b32.xlu0 %v254, %s259
        %v261 = vpop.permute.xlu0 %260
        %v262 = vlaneseq
        %v263 = vshrl.u32 %v262, 7
        %v264 = vsub.s32 2, %v263
        %v265 = vrot.slane %v238, %v264
        %267 = vbcast.lane.b32.xlu0 %v265, 256
        %v268 = vpop.permute.xlu0 %267
        %s270 = sor.u32 256, 8
        %271 = vbcast.lane.b32.xlu0 %v265, %s270
        %v272 = vpop.permute.xlu0 %271
        %v273 = vlaneseq
        %v274 = vshrl.u32 %v273, 7
        %v275 = vsub.s32 3, %v274
        %v276 = vrot.slane %v238, %v275
        %278 = vbcast.lane.b32.xlu0 %v276, 256
        %v279 = vpop.permute.xlu0 %278
        %s281 = sor.u32 256, 8
        %282 = vbcast.lane.b32.xlu0 %v276, %s281
        %v283 = vpop.permute.xlu0 %282
        %v284 = vlaneseq
        %v285 = vshrl.u32 %v284, 7
        %v286 = vsub.s32 4, %v285
        %v287 = vrot.slane %v238, %v286
        %289 = vbcast.lane.b32.xlu0 %v287, 256
        %v290 = vpop.permute.xlu0 %289
        %s292 = sor.u32 256, 8
        %293 = vbcast.lane.b32.xlu0 %v287, %s292
        %v294 = vpop.permute.xlu0 %293
        %v295 = vlaneseq
        %v296 = vshrl.u32 %v295, 7
        %v297 = vsub.s32 5, %v296
        %v298 = vrot.slane %v238, %v297
        %300 = vbcast.lane.b32.xlu0 %v298, 256
        %v301 = vpop.permute.xlu0 %300
        %s303 = sor.u32 256, 8
        %304 = vbcast.lane.b32.xlu0 %v298, %s303
        %v305 = vpop.permute.xlu0 %304
        %v306 = vlaneseq
        %v307 = vshrl.u32 %v306, 7
        %v308 = vsub.s32 6, %v307
        %v309 = vrot.slane %v238, %v308
        %311 = vbcast.lane.b32.xlu0 %v309, 256
        %v312 = vpop.permute.xlu0 %311
        %s314 = sor.u32 256, 8
        %315 = vbcast.lane.b32.xlu0 %v309, %s314
        %v316 = vpop.permute.xlu0 %315
        %v317 = vlaneseq
        %v318 = vshrl.u32 %v317, 7
        %v319 = vsub.s32 7, %v318
        %v320 = vrot.slane %v238, %v319
        %322 = vbcast.lane.b32.xlu0 %v320, 256
        %v323 = vpop.permute.xlu0 %322
        %s325 = sor.u32 256, 8
        %326 = vbcast.lane.b32.xlu0 %v320, %s325
        %v327 = vpop.permute.xlu0 %326
        %v328 = vlaneseq
        %v329 = vshrl.u32 %v328, 7
        %v330 = vsub.s32 0, %v329
        %v331 = vrot.slane %v239, %v330
        %333 = vbcast.lane.b32.xlu0 %v331, 256
        %v334 = vpop.permute.xlu0 %333
        %s336 = sor.u32 256, 8
        %337 = vbcast.lane.b32.xlu0 %v331, %s336
        %v338 = vpop.permute.xlu0 %337
        %v339 = vlaneseq
        %v340 = vshrl.u32 %v339, 7
        %v341 = vsub.s32 1, %v340
        %v342 = vrot.slane %v239, %v341
        %344 = vbcast.lane.b32.xlu0 %v342, 256
        %v345 = vpop.permute.xlu0 %344
        %s347 = sor.u32 256, 8
        %348 = vbcast.lane.b32.xlu0 %v342, %s347
        %v349 = vpop.permute.xlu0 %348
        %v350 = vlaneseq
        %v351 = vshrl.u32 %v350, 7
        %v352 = vsub.s32 2, %v351
        %v353 = vrot.slane %v239, %v352
        %355 = vbcast.lane.b32.xlu0 %v353, 256
        %v356 = vpop.permute.xlu0 %355
        %s358 = sor.u32 256, 8
        %359 = vbcast.lane.b32.xlu0 %v353, %s358
        %v360 = vpop.permute.xlu0 %359
        %v361 = vlaneseq
        %v362 = vshrl.u32 %v361, 7
        %v363 = vsub.s32 3, %v362
        %v364 = vrot.slane %v239, %v363
        %366 = vbcast.lane.b32.xlu0 %v364, 256
        %v367 = vpop.permute.xlu0 %366
        %s369 = sor.u32 256, 8
        %370 = vbcast.lane.b32.xlu0 %v364, %s369
        %v371 = vpop.permute.xlu0 %370
        %v372 = vlaneseq
        %v373 = vshrl.u32 %v372, 7
        %v374 = vsub.s32 4, %v373
        %v375 = vrot.slane %v239, %v374
        %377 = vbcast.lane.b32.xlu0 %v375, 256
        %v378 = vpop.permute.xlu0 %377
        %s380 = sor.u32 256, 8
        %381 = vbcast.lane.b32.xlu0 %v375, %s380
        %v382 = vpop.permute.xlu0 %381
        %v383 = vlaneseq
        %v384 = vshrl.u32 %v383, 7
        %v385 = vsub.s32 5, %v384
        %v386 = vrot.slane %v239, %v385
        %388 = vbcast.lane.b32.xlu0 %v386, 256
        %v389 = vpop.permute.xlu0 %388
        %s391 = sor.u32 256, 8
        %392 = vbcast.lane.b32.xlu0 %v386, %s391
        %v393 = vpop.permute.xlu0 %392
        %v394 = vlaneseq
        %v395 = vshrl.u32 %v394, 7
        %v396 = vsub.s32 6, %v395
        %v397 = vrot.slane %v239, %v396
        %399 = vbcast.lane.b32.xlu0 %v397, 256
        %v400 = vpop.permute.xlu0 %399
        %s402 = sor.u32 256, 8
        %403 = vbcast.lane.b32.xlu0 %v397, %s402
        %v404 = vpop.permute.xlu0 %403
        %v405 = vlaneseq
        %v406 = vshrl.u32 %v405, 7
        %v407 = vsub.s32 7, %v406
        %v408 = vrot.slane %v239, %v407
        %410 = vbcast.lane.b32.xlu0 %v408, 256
        %v411 = vpop.permute.xlu0 %410
        %s413 = sor.u32 256, 8
        %414 = vbcast.lane.b32.xlu0 %v408, %s413
        %v415 = vpop.permute.xlu0 %414
        %v416 = vmul.f32 %v202, %v246
        %v417 = vmul.f32 %v203, %v250
        %v418 = vmul.f32 %v204, %v257
        %v419 = vmul.f32 %v205, %v261
        %v420 = vmul.f32 %v206, %v268
        %v421 = vmul.f32 %v207, %v272
        %v422 = vmul.f32 %v208, %v279
        %v423 = vmul.f32 %v209, %v283
        %v424 = vmul.f32 %v210, %v290
        %v425 = vmul.f32 %v211, %v294
        %v426 = vmul.f32 %v212, %v301
        %v427 = vmul.f32 %v213, %v305
        %v428 = vmul.f32 %v214, %v312
        %v429 = vmul.f32 %v215, %v316
        %v430 = vmul.f32 %v216, %v323
        %v431 = vmul.f32 %v217, %v327
        %v432 = vmul.f32 %v218, %v334
        %v433 = vmul.f32 %v219, %v338
        %v434 = vmul.f32 %v220, %v345
        %v435 = vmul.f32 %v221, %v349
        %v436 = vmul.f32 %v222, %v356
        %v437 = vmul.f32 %v223, %v360
        %v438 = vmul.f32 %v224, %v367
        %v439 = vmul.f32 %v225, %v371
        %v440 = vmul.f32 %v226, %v378
        %v441 = vmul.f32 %v227, %v382
        %v442 = vmul.f32 %v228, %v389
        %v443 = vmul.f32 %v229, %v393
        %v444 = vmul.f32 %v230, %v400
        %v445 = vmul.f32 %v231, %v404
        %v446 = vmul.f32 %v232, %v411
        %v447 = vmul.f32 %v233, %v415
        %vm448 = vcmask 261120
        %v449 = vsel %vm448, %v416, 0.0
        %v450 = vsel %vm448, %v418, 0.0
        %v451 = vadd.f32 %v449, %v450
        %v452 = vsel %vm448, %v420, 0.0
        %v453 = vadd.f32 %v451, %v452
        %v454 = vsel %vm448, %v422, 0.0
        %v455 = vadd.f32 %v453, %v454
        %v456 = vsel %vm448, %v424, 0.0
        %v457 = vadd.f32 %v455, %v456
        %v458 = vsel %vm448, %v426, 0.0
        %v459 = vadd.f32 %v457, %v458
        %v460 = vsel %vm448, %v428, 0.0
        %v461 = vadd.f32 %v459, %v460
        %v462 = vsel %vm448, %v430, 0.0
        %v463 = vadd.f32 %v461, %v462
        %v464 = vsel %vm448, %v432, 0.0
        %v465 = vadd.f32 %v463, %v464
        %v466 = vsel %vm448, %v434, 0.0
        %v467 = vadd.f32 %v465, %v466
        %v468 = vsel %vm448, %v436, 0.0
        %v469 = vadd.f32 %v467, %v468
        %v470 = vsel %vm448, %v438, 0.0
        %v471 = vadd.f32 %v469, %v470
        %v472 = vsel %vm448, %v440, 0.0
        %v473 = vadd.f32 %v471, %v472
        %v474 = vsel %vm448, %v442, 0.0
        %v475 = vadd.f32 %v473, %v474
        %v476 = vsel %vm448, %v444, 0.0
        %v477 = vadd.f32 %v475, %v476
        %v478 = vsel %vm448, %v446, 0.0
        %v479 = vadd.f32 %v477, %v478
        %v480 = vsel %vm448, %v417, 0.0
        %v481 = vsel %vm448, %v419, 0.0
        %v482 = vadd.f32 %v480, %v481
        %v483 = vsel %vm448, %v421, 0.0
        %v484 = vadd.f32 %v482, %v483
        %v485 = vsel %vm448, %v423, 0.0
        %v486 = vadd.f32 %v484, %v485
        %v487 = vsel %vm448, %v425, 0.0
        %v488 = vadd.f32 %v486, %v487
        %v489 = vsel %vm448, %v427, 0.0
        %v490 = vadd.f32 %v488, %v489
        %v491 = vsel %vm448, %v429, 0.0
        %v492 = vadd.f32 %v490, %v491
        %v493 = vsel %vm448, %v431, 0.0
        %v494 = vadd.f32 %v492, %v493
        %v495 = vsel %vm448, %v433, 0.0
        %v496 = vadd.f32 %v494, %v495
        %v497 = vsel %vm448, %v435, 0.0
        %v498 = vadd.f32 %v496, %v497
        %v499 = vsel %vm448, %v437, 0.0
        %v500 = vadd.f32 %v498, %v499
        %v501 = vsel %vm448, %v439, 0.0
        %v502 = vadd.f32 %v500, %v501
        %v503 = vsel %vm448, %v441, 0.0
        %v504 = vadd.f32 %v502, %v503
        %v505 = vsel %vm448, %v443, 0.0
        %v506 = vadd.f32 %v504, %v505
        %v507 = vsel %vm448, %v445, 0.0
        %v508 = vadd.f32 %v506, %v507
        %v509 = vsel %vm448, %v447, 0.0
        %v510 = vadd.f32 %v508, %v509
        %vm511 = vcmask 130048
        %v512 = vsel %vm511, %v238, -inf
        %v513 = vsel %vm511, %v239, -inf
        %v514 = vmax.f32 %v512, %v513
        %v515 = vrot.slane %v514, 4
        %v516 = vmax.f32 %v514, %v515
        %v517 = vrot.slane %v516, 2
        %v518 = vmax.f32 %v516, %v517
        %v519 = vrot.slane %v518, 1
        %v520 = vmax.f32 %v518, %v519
        %522 = vbcast.lane.b32.xlu0 %v520, 256
        %v523 = vpop.permute.xlu0 %522
        %s525 = sor.u32 256, 8
        %526 = vbcast.lane.b32.xlu0 %v520, %s525
        %v527 = vpop.permute.xlu0 %526
        %v528 = vmul.f32 %v479, %v523
        %v529 = vmul.f32 %v510, %v527
        %530 = vst.msk [vmem:[%s201] sm:$0xff] %vm448, %v528
        %531 = vst.msk [vmem:[%s201 + $0x8] sm:$0xff] %vm448, %v529
        %s532 = sand.u32 %s82, 1
        %s533 = scalar_lea.sflag [#allocation4], %s532
        %s534 = sand.u32 %s82, 1
        %s535 = smul.addr %s534, 16
        %s536 = scalar_lea.vmem [#allocation7], %s535
        // Predicated region
        $region37: #{tpu_custom_call.1} parent=27 // pred_check
          %p537 = pneg %p92
        $region38: #{tpu_custom_call.1} parent=27 // pred_check_branch
          %539 = sbr.rel (%p537) target = $region40
        $region39: #{tpu_custom_call.1} parent=27 // pred_region
          %s541 = ssub.s32 256, 256
          %542 = vsyncadd %s533, %s541
          %s543 = smul.addr %s22, 2
          %s544 = smul.addr %s543, 128
          %s545 = scalar_lea.hbm %s2, %s544
          %s546 = sshll.u32 %s536, 4
          %s547 = int_to_ptr.vmem [resolvable:$true] %s546
          %552 = dma.vmem_to_hbm [thread:$0]  %s547, 256, %s545, %s533, 128, 128, 8
        $region40: #{tpu_custom_call.1} parent=27 // pred_fallthru
          _
      $region28: #{tpu_custom_call.1} parent=5 // pred_fallthru
        _
      %p553 = scmp.le.s32.totalorder 2, %s17
      // Predicated region
      $region41: #{tpu_custom_call.1} parent=5 // pred_check
        %p554 = pneg %p553
      $region42: #{tpu_custom_call.1} parent=5 // pred_check_branch
        %556 = sbr.rel (%p554) target = $region44
      $region43: #{tpu_custom_call.1} parent=5 // pred_region
        %s557 = ssub.s32 %s17, 2
        // Predicated region
        $region45: #{tpu_custom_call.1} parent=43 // pred_check
          %p558 = pneg %p98
        $region46: #{tpu_custom_call.1} parent=43 // pred_check_branch
          %560 = sbr.rel (%p558) target = $region48
        $region47: #{tpu_custom_call.1} parent=43 // pred_region
          %s561 = sand.u32 %s83, 1
          %s562 = scalar_lea.sflag [#allocation4], %s561
          %s563 = sand.u32 %s83, 1
          %s564 = smul.addr %s563, 16
          %s565 = scalar_lea.vmem [#allocation7], %s564
          %566 = dma.done %s562, 256
        $region48: #{tpu_custom_call.1} parent=43 // pred_fallthru
          _
      $region44: #{tpu_custom_call.1} parent=5 // pred_fallthru
        _
    $region6: #{tpu_custom_call.1} parent=1 // loop_footer
      %s21 = sadd.s32 1, %s17
    $region7: #{tpu_custom_call.1} parent=1 // loop_footer_branch
      %16 = sbr.rel target = $region3
    $region8: #{tpu_custom_call.1} parent=1 // loop_exit
      _
    %567 = vsyncpa [#allocation3], 1
    %s568 = scalar_lea.sflag [#allocation3], 1
    %569 = vsyncpa %s568, 1
    %570 = vsyncpa [#allocation6], 1
    %s571 = scalar_lea.sflag [#allocation6], 1
    %572 = vsyncpa %s571, 1
    %573 = vsyncpa [#allocation4], 1
    %s574 = scalar_lea.sflag [#allocation4], 1
    %575 = vsyncpa %s574, 1

</llo_original>
